<compile_context>
chip_gen: v5e
topology: v5e:2x2
jax: 0.10.0
libtpu: 0.0.40
codegen_flags: <defaults>
</compile_context>

<pallas_src>
import functools

import jax
import jax.numpy as jnp
from jax.experimental import pallas as pl
from jax.experimental.pallas import tpu as pltpu

_MIB = 1024 * 1024


def _round_up(x, m):
    return ((x + m - 1) // m) * m


def _vmem_budget_and_limit():
    """Per-generation (tile-picking budget, scoped-VMEM limit) in bytes."""
    cap = None
    try:
        cap = int(pltpu.get_tpu_info().vmem_capacity_bytes)
    except Exception:
        cap = None
    if cap is None:
        try:
            kind = jax.devices()[0].device_kind.lower()
        except Exception:
            kind = ""
        cap = 64 * _MIB if "v7" in kind else 128 * _MIB
    cap = max(64 * _MIB, min(cap, 128 * _MIB))
    budget = int(cap * 0.60)               # what the tile-picker may spend
    limit = min(int(cap * 0.85), 112 * _MIB)  # scoped limit handed to Mosaic
    return budget, limit


def _pick_batch_tile(B, S, H, Cp, weight_bytes, budget_bytes):
    """Largest 8/128-aligned batch tile whose double-buffered tiles fit VMEM."""
    itemsize = 4
    avail = max(budget_bytes - weight_bytes, 1 * _MIB)
    # Hidden + mask + output tiles are each double-buffered by the pipeline.
    per_row = 2 * (S * H + S + Cp) * itemsize
    tb = max(1, avail // per_row)
    if tb >= B:
        # Whole batch fits in one tile.  Split into >=2 grid steps when the
        # batch is large enough to keep 8-sublane alignment, so both v7x
        # TensorCores get work under dimension_semantics=("parallel",).
        if B >= 16:
            return min(_round_up(pl.cdiv(B, 2), 8), B)
        return B
    if tb >= 128:
        tb = (tb // 128) * 128   # full MXU rows / dense stores
    else:
        tb = max(8, (tb // 8) * 8)
    return min(tb, B)


def combined_kernel(hidden_ref, mask_ref, w1_ref, b1_ref, w2_ref, b2_ref,
                    out_ref):
    # hidden_ref: [TB, S, H]   mask_ref: [TB, S]
    hidden = hidden_ref[...].astype(jnp.float32)
    mask = mask_ref[...].astype(jnp.float32)

    # Masked sum-pool on the VPU (elementwise multiply) + sublane reduce over
    # S.  This keeps pooling off the MXU (a batched einsum lowers to TB
    # serialized M=1 matmuls) so it hides under the hidden-tile DMA.
    pooled = jnp.sum(hidden * mask[:, :, None], axis=1)            # [TB, H]

    # Exact normalization on the tiny [TB, 1] denominator.  Clamp guards
    # fully-padded rows (reference would NaN; here they yield MLP(0)).
    denom = jnp.maximum(jnp.sum(mask, axis=-1, keepdims=True), 1.0)
    pooled = pooled / denom

    # MLP head: Linear -> ReLU -> Linear.  D1 / C are pre-padded to multiples
    # of 128 in the wrapper so both matmuls and the final store are lane-dense.
    h1 = jnp.dot(pooled, w1_ref[...], preferred_element_type=jnp.float32)
    h1 = jnp.maximum(h1 + b1_ref[...], 0.0)
    logits = jnp.dot(h1, w2_ref[...], preferred_element_type=jnp.float32)
    out_ref[...] = (logits + b2_ref[...]).astype(out_ref.dtype)


@functools.partial(jax.jit, static_argnames=())
def combined_forward(last_hidden_state, attention_mask, w1, b1, w2, b2):
    B, S, H = last_hidden_state.shape
    D1 = w1.shape[1]
    C = w2.shape[1]

    # Lane-dense zero-padding of the MLP dims (numerically identical).
    D1p = _round_up(D1, 128)
    Cp = _round_up(C, 128)
    b1 = jnp.reshape(b1, (1, D1)).astype(jnp.float32)
    b2 = jnp.reshape(b2, (1, C)).astype(jnp.float32)
    w1p = jnp.pad(w1.astype(jnp.float32), ((0, 0), (0, D1p - D1)))
    b1p = jnp.pad(b1, ((0, 0), (0, D1p - D1)))
    w2p = jnp.pad(w2.astype(jnp.float32), ((0, D1p - D1), (0, Cp - C)))
    b2p = jnp.pad(b2, ((0, 0), (0, Cp - C)))

    # VMEM accounting: weight/bias blocks are small but still double-buffered
    # by the pipeline (constant index_map).
    weight_bytes = 2 * (H * D1p + D1p + D1p * Cp + Cp) * 4
    budget, vmem_limit = _vmem_budget_and_limit()
    TB = _pick_batch_tile(B, S, H, Cp, weight_bytes, budget)
    grid = (pl.cdiv(B, TB),)

    # Advisory cost: this kernel is HBM-bandwidth-bound on the hidden states.
    bytes_accessed = 4 * (B * S * H + B * S + B * Cp
                          + H * D1p + D1p + D1p * Cp + Cp)
    flops = 2 * B * S * H + 2 * B * H * D1p + 2 * B * D1p * Cp
    cost = pl.CostEstimate(flops=flops, transcendentals=0,
                           bytes_accessed=bytes_accessed)

    out_padded = pl.pallas_call(
        combined_kernel,
        out_shape=jax.ShapeDtypeStruct((B, Cp), jnp.float32),
        grid=grid,
        in_specs=[
            pl.BlockSpec((TB, S, H), lambda i: (i, 0, 0)),   # hidden tile
            pl.BlockSpec((TB, S), lambda i: (i, 0)),         # mask tile
            pl.BlockSpec((H, D1p), lambda i: (0, 0)),        # w1 (resident)
            pl.BlockSpec((1, D1p), lambda i: (0, 0)),        # b1
            pl.BlockSpec((D1p, Cp), lambda i: (0, 0)),       # w2
            pl.BlockSpec((1, Cp), lambda i: (0, 0)),         # b2
        ],
        out_specs=pl.BlockSpec((TB, Cp), lambda i: (i, 0)),
        compiler_params=pltpu.CompilerParams(
            dimension_semantics=("parallel",),
            vmem_limit_bytes=vmem_limit),
        cost_estimate=cost,
    )(last_hidden_state, attention_mask, w1p, b1p, w2p, b2p)

    return out_padded[:, :C]


def reference_forward(last_hidden_state, attention_mask, w1, b1, w2, b2):
    mask_norm = attention_mask / jnp.sum(attention_mask, -1, keepdims=True)
    pooled = jnp.einsum('bsh,bs->bh', last_hidden_state, mask_norm)
    h1 = jnp.maximum(pooled @ w1 + b1[None, :], 0.0)
    return h1 @ w2 + b2[None, :]


def _make_inputs(key, B, S, H, D1, C):
    k_h, k_l, k_w1, k_b1, k_w2, k_b2 = jax.random.split(key, 6)
    last_hidden_state = jax.random.normal(k_h, (B, S, H), dtype=jnp.float32)
    # Variable-length padding mask (float, like the casted attention_mask),
    # every row has at least one valid token.
    lengths = jax.random.randint(k_l, (B,), 1, S + 1)
    attention_mask = (jnp.arange(S)[None, :] < lengths[:, None]).astype(
        jnp.float32)
    # PyTorch-style 1-D biases.
    w1 = jax.random.normal(k_w1, (H, D1), dtype=jnp.float32) * 0.1
    b1 = jax.random.normal(k_b1, (D1,), dtype=jnp.float32) * 0.1
    w2 = jax.random.normal(k_w2, (D1, C), dtype=jnp.float32) * 0.1
    b2 = jax.random.normal(k_b2, (C,), dtype=jnp.float32) * 0.1
    return last_hidden_state, attention_mask, w1, b1, w2, b2


if __name__ == "__main__":
    key = jax.random.PRNGKey(0)
    k_small, k_big = jax.random.split(key)

    # Small shapes consistent with the forward: batch=2, seq=8, hidden=32,
    # mlp hidden=32, num_labels=4.
    args = _make_inputs(k_small, B=2, S=8, H=32, D1=32, C=4)
    out = jax.block_until_ready(combined_forward(*args))
    ref = reference_forward(*args)
    assert out.shape == (2, 4)
    assert jnp.allclose(out, ref, atol=1e-5, rtol=1e-5), (
        f"max abs err {jnp.max(jnp.abs(out - ref))}")

    # Second check: batch not divisible by the tile (exercises the ragged
    # last grid step + >=2 grid steps / megacore path).
    args_big = _make_inputs(k_big, B=20, S=8, H=32, D1=32, C=4)
    out_big = jax.block_until_ready(combined_forward(*args_big))
    ref_big = reference_forward(*args_big)
    assert out_big.shape == (20, 4)
    assert jnp.allclose(out_big, ref_big, atol=1e-5, rtol=1e-5), (
        f"max abs err {jnp.max(jnp.abs(out_big - ref_big))}")

    print("KERNEL_OK")
</pallas_src>

<mosaic_0001>
module attributes {stable_mosaic.version = 11 : i64} {
  func.func @combined_kernel(%arg0: i32, %arg1: memref<2x8x32xf32, #tpu.memory_space<vmem>>, %arg2: memref<2x8xf32, #tpu.memory_space<vmem>>, %arg3: memref<32x128xf32, #tpu.memory_space<vmem>>, %arg4: memref<1x128xf32, #tpu.memory_space<vmem>>, %arg5: memref<128x128xf32, #tpu.memory_space<vmem>>, %arg6: memref<1x128xf32, #tpu.memory_space<vmem>>, %arg7: memref<2x128xf32, #tpu.memory_space<vmem>>) attributes {dimension_semantics = [#tpu.dimension_semantics<parallel>], iteration_bounds = array<i64: 1>, scalar_prefetch = 0 : i64, scratch_operands = 0 : i64, tpu.core_type = #tpu.core_type<tc>, window_params = [{transform_indices = @transform_0, window_bounds = array<i64: 2, 8, 32>}, {transform_indices = @transform_1, window_bounds = array<i64: 2, 8>}, {pipeline_mode = #tpu.pipeline_mode<synchronous>, transform_indices = @transform_2, window_bounds = array<i64: 32, 128>}, {pipeline_mode = #tpu.pipeline_mode<synchronous>, transform_indices = @transform_3, window_bounds = array<i64: 1, 128>}, {pipeline_mode = #tpu.pipeline_mode<synchronous>, transform_indices = @transform_4, window_bounds = array<i64: 128, 128>}, {pipeline_mode = #tpu.pipeline_mode<synchronous>, transform_indices = @transform_5, window_bounds = array<i64: 1, 128>}, {transform_indices = @transform_6, window_bounds = array<i64: 2, 128>}]} {
    %c0 = arith.constant 0 : index
    %c0_0 = arith.constant 0 : index
    %c0_1 = arith.constant 0 : index
    %0 = vector.load %arg1[%c0, %c0_0, %c0_1] : memref<2x8x32xf32, #tpu.memory_space<vmem>>, vector<2x8x32xf32>
    %c0_2 = arith.constant 0 : index
    %c0_3 = arith.constant 0 : index
    %1 = vector.load %arg2[%c0_2, %c0_3] : memref<2x8xf32, #tpu.memory_space<vmem>>, vector<2x8xf32>
    %2 = vector.shape_cast %1 : vector<2x8xf32> to vector<2x8x1xf32>
    %3 = vector.broadcast %2 : vector<2x8x1xf32> to vector<2x8x32xf32>
    %4 = arith.mulf %0, %3 : vector<2x8x32xf32>
    %cst = arith.constant dense<0.000000e+00> : vector<2x32xf32>
    %5 = vector.multi_reduction <add>, %4, %cst [1] : vector<2x8x32xf32> to vector<2x32xf32>
    %cst_4 = arith.constant dense<0.000000e+00> : vector<2xf32>
    %6 = vector.multi_reduction <add>, %1, %cst_4 [1] : vector<2x8xf32> to vector<2xf32>
    %7 = vector.shape_cast %6 : vector<2xf32> to vector<2x1xf32>
    %cst_5 = arith.constant 1.000000e+00 : f32
    %8 = vector.broadcast %cst_5 : f32 to vector<2x1xf32>
    %9 = arith.maximumf %7, %8 : vector<2x1xf32>
    %10 = vector.broadcast %9 : vector<2x1xf32> to vector<2x32xf32>
    %11 = arith.divf %5, %10 : vector<2x32xf32>
    %c0_6 = arith.constant 0 : index
    %c0_7 = arith.constant 0 : index
    %12 = vector.load %arg3[%c0_6, %c0_7] : memref<32x128xf32, #tpu.memory_space<vmem>>, vector<32x128xf32>
    %cst_8 = arith.constant dense<0.000000e+00> : vector<2x128xf32>
    %13 = tpu.matmul %11, %12, %cst_8 {dimension_numbers = #tpu.dot_dimension_numbers<[1], [0], [0], [1], [0, 0, 1, 1], [], []>} : vector<2x32xf32>, vector<32x128xf32>, vector<2x128xf32> -> vector<2x128xf32>
    %c0_9 = arith.constant 0 : index
    %c0_10 = arith.constant 0 : index
    %14 = vector.load %arg4[%c0_9, %c0_10] : memref<1x128xf32, #tpu.memory_space<vmem>>, vector<1x128xf32>
    %15 = vector.broadcast %14 : vector<1x128xf32> to vector<2x128xf32>
    %16 = arith.addf %13, %15 : vector<2x128xf32>
    %cst_11 = arith.constant 0.000000e+00 : f32
    %17 = vector.broadcast %cst_11 : f32 to vector<2x128xf32>
    %18 = arith.maximumf %16, %17 : vector<2x128xf32>
    %c0_12 = arith.constant 0 : index
    %c0_13 = arith.constant 0 : index
    %19 = vector.load %arg5[%c0_12, %c0_13] : memref<128x128xf32, #tpu.memory_space<vmem>>, vector<128x128xf32>
    %cst_14 = arith.constant dense<0.000000e+00> : vector<2x128xf32>
    %20 = tpu.matmul %18, %19, %cst_14 {dimension_numbers = #tpu.dot_dimension_numbers<[1], [0], [0], [1], [0, 0, 1, 1], [], []>} : vector<2x128xf32>, vector<128x128xf32>, vector<2x128xf32> -> vector<2x128xf32>
    %c0_15 = arith.constant 0 : index
    %c0_16 = arith.constant 0 : index
    %21 = vector.load %arg6[%c0_15, %c0_16] : memref<1x128xf32, #tpu.memory_space<vmem>>, vector<1x128xf32>
    %22 = vector.broadcast %21 : vector<1x128xf32> to vector<2x128xf32>
    %23 = arith.addf %20, %22 : vector<2x128xf32>
    %c0_17 = arith.constant 0 : index
    %c0_18 = arith.constant 0 : index
    %24 = vector.load %arg7[%c0_17, %c0_18] : memref<2x128xf32, #tpu.memory_space<vmem>>, vector<2x128xf32>
    tpu.vector_store %arg7[%c0_17, %c0_18], %23 {strides = array<i32>} : memref<2x128xf32, #tpu.memory_space<vmem>>, vector<2x128xf32>,
    return
  }
  func.func @transform_0(%arg0: i32) -> (i32, i32, i32) {
    %c0_i32 = arith.constant 0 : i32
    %c0_i32_0 = arith.constant 0 : i32
    %c0_i32_1 = arith.constant 0 : i32
    return %arg0, %c0_i32, %c0_i32_0 : i32, i32, i32
  }
  func.func @transform_1(%arg0: i32) -> (i32, i32) {
    %c0_i32 = arith.constant 0 : i32
    %c0_i32_0 = arith.constant 0 : i32
    return %arg0, %c0_i32 : i32, i32
  }
  func.func @transform_2(%arg0: i32) -> (i32, i32) {
    %c0_i32 = arith.constant 0 : i32
    %c0_i32_0 = arith.constant 0 : i32
    %c0_i32_1 = arith.constant 0 : i32
    return %c0_i32, %c0_i32_0 : i32, i32
  }
  func.func @transform_3(%arg0: i32) -> (i32, i32) {
    %c0_i32 = arith.constant 0 : i32
    %c0_i32_0 = arith.constant 0 : i32
    %c0_i32_1 = arith.constant 0 : i32
    return %c0_i32, %c0_i32_0 : i32, i32
  }
  func.func @transform_4(%arg0: i32) -> (i32, i32) {
    %c0_i32 = arith.constant 0 : i32
    %c0_i32_0 = arith.constant 0 : i32
    %c0_i32_1 = arith.constant 0 : i32
    return %c0_i32, %c0_i32_0 : i32, i32
  }
  func.func @transform_5(%arg0: i32) -> (i32, i32) {
    %c0_i32 = arith.constant 0 : i32
    %c0_i32_0 = arith.constant 0 : i32
    %c0_i32_1 = arith.constant 0 : i32
    return %c0_i32, %c0_i32_0 : i32, i32
  }
  func.func @transform_6(%arg0: i32) -> (i32, i32) {
    %c0_i32 = arith.constant 0 : i32
    %c0_i32_0 = arith.constant 0 : i32
    return %arg0, %c0_i32 : i32, i32
  }
}

</mosaic_0001>

<llo_original>
// kernel: combined_forward.1
$region0: #{combined_forward.1}
  #allocation0 [shape = 'u32[]', space=smem, size = 0x4, offset = 0x4, fixed_abs, tag = 'smem constant byte address 0x4 - core index']
  #allocation1 [shape = 'u32[72,128]{1,0:T(1,128)}', space=vmem, size = 0x9000, scoped, tag = 'internal scratch']
  %s0 = inlined_call_operand.vmem [shape: f32[2,8,32], index: 0, kind: input, shape index: {}]
  %s1 = inlined_call_operand.vmem [shape: f32[2,8], index: 1, kind: input, shape index: {}]
  %s2 = inlined_call_operand.vmem [shape: f32[32,128], index: 2, kind: input, shape index: {}]
  %s3 = inlined_call_operand.vmem [shape: f32[1,128], index: 3, kind: input, shape index: {}]
  %s4 = inlined_call_operand.vmem [shape: f32[128,128], index: 4, kind: input, shape index: {}]
  %s5 = inlined_call_operand.vmem [shape: f32[1,128], index: 5, kind: input, shape index: {}]
  %s6 = inlined_call_operand.hbm [shape: f32[2,128], index: 6, kind: output, shape index: {}]
  %s7 = sld [smem:[#allocation0]]
  $region34: #{combined_forward.1} parent=0
    _
  %s9 = ssub.s32 1, %s7
  %s10 = scalar_select 0, %s9, %s7
  $region1: #{combined_forward.1} parent=0
    #allocation2 [shape = 'u8[1024]{0}', space=vmem, size = 0x400, scoped, tag = 'output window, operand 0, single buffered']
    #allocation3 [shape = 's32[1]{0}', space=sflag, size = 0x4, scoped, tag = 'scoped memory for combined_forward.1']
    %11 = vsyncpa [#allocation3], 0
    // Predicated region
    $region2: #{combined_forward.1} parent=1 // pred_check
      _
    $region3: #{combined_forward.1} parent=1 // pred_check_branch
      %13 = sbr.rel (0) target = $region5
    $region4: #{combined_forward.1} parent=1 // pred_region
      _
    $region5: #{combined_forward.1} parent=1 // pred_fallthru
      _
    // Predicated region
    $region6: #{combined_forward.1} parent=1 // pred_check
      _
    $region7: #{combined_forward.1} parent=1 // pred_check_branch
      %15 = sbr.rel (0) target = $region9
    $region8: #{combined_forward.1} parent=1 // pred_region
      _
    $region9: #{combined_forward.1} parent=1 // pred_fallthru
      _
    // Predicated region
    $region10: #{combined_forward.1} parent=1 // pred_check
      _
    $region11: #{combined_forward.1} parent=1 // pred_check_branch
      %17 = sbr.rel (0) target = $region13
    $region12: #{combined_forward.1} parent=1 // pred_region
      _
    $region13: #{combined_forward.1} parent=1 // pred_fallthru
      _
    // Predicated region
    $region14: #{combined_forward.1} parent=1 // pred_check
      _
    $region15: #{combined_forward.1} parent=1 // pred_check_branch
      %19 = sbr.rel (0) target = $region17
    $region16: #{combined_forward.1} parent=1 // pred_region
      _
    $region17: #{combined_forward.1} parent=1 // pred_fallthru
      _
    // Predicated region
    $region18: #{combined_forward.1} parent=1 // pred_check
      _
    $region19: #{combined_forward.1} parent=1 // pred_check_branch
      %21 = sbr.rel (0) target = $region21
    $region20: #{combined_forward.1} parent=1 // pred_region
      _
    $region21: #{combined_forward.1} parent=1 // pred_fallthru
      _
    // Predicated region
    $region22: #{combined_forward.1} parent=1 // pred_check
      _
    $region23: #{combined_forward.1} parent=1 // pred_check_branch
      %23 = sbr.rel (0) target = $region25
    $region24: #{combined_forward.1} parent=1 // pred_region
      _
    $region25: #{combined_forward.1} parent=1 // pred_fallthru
      _
    %v24 = vld [vmem:[%s0] sm:$0xff]
    %v25 = vld [vmem:[%s0 + $0x8] sm:$0xff]
    %v26 = vld [vmem:[%s1] sm:$0x3]
    %v27 = vperm.slane %v26, 0
    %v28 = vlaneseq
    %v29 = vshrl.u32 %v28, 7
    %31 = vset.pattern.permute.xlu0 %v29
    %32 = vperm.xlu0 %31, %v27
    %v33 = vpop.permute.xlu0 %32
    %v34 = vperm.slane %v26, 1
    %v35 = vlaneseq
    %v36 = vshrl.u32 %v35, 7
    %38 = vset.pattern.permute.xlu0 %v36
    %39 = vperm.xlu0 %38, %v34
    %v40 = vpop.permute.xlu0 %39
    %v41 = vmul.f32 %v24, %v33
    %v42 = vmul.f32 %v25, %v40
    %vm43 = vcmask 261120
    %v44 = vsel %vm43, %v41, 0.0
    %v45 = vrot.slane %v44, 4
    %v46 = vadd.f32 %v44, %v45
    %v47 = vrot.slane %v46, 2
    %v48 = vadd.f32 %v46, %v47
    %v49 = vrot.slane %v48, 1
    %v50 = vadd.f32 %v48, %v49
    %v51 = vsel %vm43, %v42, 0.0
    %v52 = vrot.slane %v51, 4
    %v53 = vadd.f32 %v51, %v52
    %v54 = vrot.slane %v53, 2
    %v55 = vadd.f32 %v53, %v54
    %v56 = vrot.slane %v55, 1
    %v57 = vadd.f32 %v55, %v56
    %vm58 = vcmask 58368
    %v59 = vsel %vm58, %v26, 0.0
    %60 = vadd.xlane.f32.xlu0 %v59
    %v61 = vpop.xlane.xlu0 %60
    %v62 = vmax.f32 %v61, 1.0
    %v64 = vrot.slane %v62, 1
    %v67 = vrcp.pop %v62
    %v68 = vmul.f32 %v62, %v67
    %v69 = vsub.f32 1.0, %v68
    %v70 = vmul.f32 %v67, %v69
    %v71 = vadd.f32 %v67, %v70
    %vm72 = vweird.f32 %v62
    %vm73 = vweird.f32 %v67
    %vm74 = vmor %vm72, %vm73
    %v75 = vsel %vm74, %v67, %v71
    %v76 = vand.u32 2147483647, %v62
    %vm77 = vcmp.eq.f32.partialorder %v76, 8.507059e+37
    %v78 = vand.u32 %v62, 2147483648
    %v79 = vor.u32 1.1754944e-38, %v78
    %v80 = vsel %vm77, %v79, %v75
    %v81 = vmul.f32 %v50, %v80
    %v82 = vrcp.pop %v64
    %v83 = vmul.f32 %v64, %v82
    %v84 = vsub.f32 1.0, %v83
    %v85 = vmul.f32 %v82, %v84
    %v86 = vadd.f32 %v82, %v85
    %vm87 = vweird.f32 %v64
    %vm88 = vweird.f32 %v82
    %vm89 = vmor %vm87, %vm88
    %v90 = vsel %vm89, %v82, %v86
    %v91 = vand.u32 2147483647, %v64
    %vm92 = vcmp.eq.f32.partialorder %v91, 8.507059e+37
    %v93 = vand.u32 %v64, 2147483648
    %v94 = vor.u32 1.1754944e-38, %v93
    %v95 = vsel %vm92, %v94, %v90
    %v96 = vmul.f32 %v57, %v95
    %v97 = vld [vmem:[%s2] sm:$0xff]
    %v98 = vld [vmem:[%s2 + $0x8] sm:$0xff]
    %v99 = vld [vmem:[%s2 + $0x10] sm:$0xff]
    %v100 = vld [vmem:[%s2 + $0x18] sm:$0xff]
    %v101 = vld [vmem:[%s3] sm:$0x1]
    %v103 = vperm.slane %v101, 0
    %v107 = vrot.slane %v96, 7
    %vm108 = vcmask 1041409
    %v109 = vsel %vm108, %v107, %v81
    %v110 = vsel %vm43, %v109, 0
    %112 = vmatpush.msra.mxu0 0.0
    %113 = vmatpush.msra.mxu0 0.0
    %114 = vmatpush.msra.mxu0 0.0
    %115 = vmatpush.msra.mxu0 0.0
    %116 = vmatpush.msra.mxu0 0.0
    %117 = vmatpush.msra.mxu0 0.0
    %118 = vmatpush.msra.mxu0 0.0
    %119 = vmatpush.msra.mxu0 0.0
    %120 = vmatpush.msra.mxu0 0.0
    %121 = vmatpush.msra.mxu0 0.0
    %122 = vmatpush.msra.mxu0 0.0
    %123 = vmatpush.msra.mxu0 0.0
    %124 = vmatpush.msra.mxu0 %v100
    %125 = vmatpush.msra.mxu0 %v99
    %126 = vmatpush.msra.mxu0 %v98
    %127 = vmatpush.msra.mxu0 %v97
    %128 = vmatmul.f32.gmra.mxu0 %v110
    %v129 = vpop.f32.mrf.mxu0
    %v130 = vadd.f32 %v103, %v129
    %131 = vdwg.mxu0
    %v132 = vmax.f32 %v130, 0.0
    %v133 = vld [vmem:[%s4] sm:$0xff]
    %v134 = vld [vmem:[%s4 + $0x8] sm:$0xff]
    %v135 = vld [vmem:[%s4 + $0x10] sm:$0xff]
    %v136 = vld [vmem:[%s4 + $0x18] sm:$0xff]
    %v137 = vld [vmem:[%s4 + $0x20] sm:$0xff]
    %v138 = vld [vmem:[%s4 + $0x28] sm:$0xff]
    %v139 = vld [vmem:[%s4 + $0x30] sm:$0xff]
    %v140 = vld [vmem:[%s4 + $0x38] sm:$0xff]
    %v141 = vld [vmem:[%s4 + $0x40] sm:$0xff]
    %v142 = vld [vmem:[%s4 + $0x48] sm:$0xff]
    %v143 = vld [vmem:[%s4 + $0x50] sm:$0xff]
    %v144 = vld [vmem:[%s4 + $0x58] sm:$0xff]
    %v145 = vld [vmem:[%s4 + $0x60] sm:$0xff]
    %v146 = vld [vmem:[%s4 + $0x68] sm:$0xff]
    %v147 = vld [vmem:[%s4 + $0x70] sm:$0xff]
    %v148 = vld [vmem:[%s4 + $0x78] sm:$0xff]
    %v149 = vld [vmem:[%s5] sm:$0x1]
    %v151 = vperm.slane %v149, 0
    %153 = vmatpush.msra.mxu0 %v148
    %154 = vmatpush.msra.mxu0 %v147
    %155 = vmatpush.msra.mxu0 %v146
    %156 = vmatpush.msra.mxu0 %v145
    %157 = vmatpush.msra.mxu0 %v144
    %158 = vmatpush.msra.mxu0 %v143
    %159 = vmatpush.msra.mxu0 %v142
    %160 = vmatpush.msra.mxu0 %v141
    %161 = vmatpush.msra.mxu0 %v140
    %162 = vmatpush.msra.mxu0 %v139
    %163 = vmatpush.msra.mxu0 %v138
    %164 = vmatpush.msra.mxu0 %v137
    %165 = vmatpush.msra.mxu0 %v136
    %166 = vmatpush.msra.mxu0 %v135
    %167 = vmatpush.msra.mxu0 %v134
    %168 = vmatpush.msra.mxu0 %v133
    %169 = vmatmul.f32.gmra.mxu0 %v132
    %v170 = vpop.f32.mrf.mxu0
    %v171 = vadd.f32 %v151, %v170
    %172 = vdwg.mxu0
    %173 = vst [vmem:[#allocation2] sm:$0x3] %v171
    // Predicated region
    $region26: #{combined_forward.1} parent=1 // pred_check
      _
    $region27: #{combined_forward.1} parent=1 // pred_check_branch
      %175 = sbr.rel (0) target = $region29
    $region28: #{combined_forward.1} parent=1 // pred_region
      %177 = vsyncadd [#allocation3], 0
      %s179 = sshll.u32 [#allocation2], 4
      %s180 = int_to_ptr.vmem [resolvable:$true] %s179
      %s181 = sshll.u32 %s6, 4
      %s182 = int_to_ptr.hbm [resolvable:$true] %s181
      %184 = dma.vmem_to_hbm [thread:$0]  %s180, 32, %s182, [#allocation3]
    $region29: #{combined_forward.1} parent=1 // pred_fallthru
      _
    // Predicated region
    $region30: #{combined_forward.1} parent=1 // pred_check
      _
    $region31: #{combined_forward.1} parent=1 // pred_check_branch
      %186 = sbr.rel (0) target = $region33
    $region32: #{combined_forward.1} parent=1 // pred_region
      %188 = dma.done [#allocation3], 32
    $region33: #{combined_forward.1} parent=1 // pred_fallthru
      _
    %189 = vsyncpa [#allocation3], 1

</llo_original>
